<compile_context>
chip_gen: v5e
topology: v5e:2x2
jax: 0.10.0
libtpu: 0.0.40
codegen_flags: <defaults>
</compile_context>

<pallas_src>
import functools

import jax
import jax.numpy as jnp
from jax import lax
from jax.experimental import pallas as pl
from jax.experimental.pallas import tpu as pltpu


# ----------------------------------------------------------------------------
# Kernel
# ----------------------------------------------------------------------------
def generator_kernel(a_ref, mask_ref, id_tmp_ref, w_id_ref, b_id_ref,
                     w_ref, b_ref, o_ref, *, layernum, G, n,
                     topo_activation, topo_thrd):
    """Fully fused forward:
         id_output = sigmoid(layers_id(id_output_temp))
         for each graph g:
           y = Ainput_trigger[g] * id_output
           y = layers(y); y = topo_activation(y)
           y = (y + y.T) / 2
           y = GradWhere(y, thrd) * topomask[g]
    """

    def mlp(x, ws, bs):
        # y = x @ W_l^T + b_l ; ReLU between layers; Dropout -> identity.
        for l in range(layernum):
            x = lax.dot_general(
                x, ws[l],
                dimension_numbers=(((1,), (1,)), ((), ())),   # x @ W^T, W:(out,in)
                preferred_element_type=jnp.float32) + bs[l]
            if l < layernum - 1:
                x = jnp.maximum(x, 0.0)                       # ReLU(inplace=True)
        return x

    # ---- id_output = sigmoid(layers_id(id_output_temp)) --------------------
    id_out = jax.nn.sigmoid(mlp(id_tmp_ref[...], w_id_ref, b_id_ref))   # (n, n)

    # ---- batched per-graph hot path -----------------------------------------
    # Stack all G graphs along the sublane axis -> one matmul per layer.
    y = jnp.concatenate([a_ref[g] * id_out for g in range(G)], axis=0)  # (G*n, n)
    y = mlp(y, w_ref, b_ref)
    if topo_activation == "relu":
        y = jnp.maximum(y, 0.0)
    elif topo_activation == "sigmoid":
        y = jax.nn.sigmoid(y)
    # any other string: no activation (matches PyTorch if/elif fallthrough)

    # Per-graph epilogue: symmetrize, hard threshold (GradWhere.forward) fused
    # with the topomask multiply into one select.
    for g in range(G):
        yg = y[g * n:(g + 1) * n, :]
        yg = (yg + yg.T) * 0.5
        o_ref[g] = jnp.where(yg > topo_thrd, mask_ref[g], jnp.float32(0.0))


# ----------------------------------------------------------------------------
# Wrapper
# ----------------------------------------------------------------------------
def generator_forward(params, Ainput_trigger, topomask, id_output_temp,
                      bkd_gids_train, *, layernum, trigger_size,
                      topo_activation="relu", topo_thrd=0.5,
                      bkd_dr=None, bkd_nid_groups=None):
    """params = (w_id, b_id, w, b) with
         w_id, w : (layernum, n, n)  in PyTorch (out, in) layout
         b_id, b : (layernum, 1, n)
       Ainput_trigger, topomask : (G, n, n) stacked per gid in bkd_gids_train.
    """
    w_id, b_id, w, b = params
    n = id_output_temp.shape[0]
    G = Ainput_trigger.shape[0]

    rst_bkdA = {}
    if G > 0:
        vmem = pl.BlockSpec(memory_space=pltpu.MemorySpace.VMEM)
        out = pl.pallas_call(
            functools.partial(generator_kernel, layernum=layernum, G=G, n=n,
                              topo_activation=topo_activation,
                              topo_thrd=float(topo_thrd)),
            out_shape=jax.ShapeDtypeStruct((G, n, n), jnp.float32),
            in_specs=[vmem] * 7,
            out_specs=vmem,
        )(Ainput_trigger, topomask, id_output_temp, w_id, b_id, w, b)
        rst_bkdA = {gid: out[i] for i, gid in enumerate(bkd_gids_train)}

    edges_len = 0
    if len(bkd_gids_train) != 0:
        edges_len_avg = edges_len / len(bkd_gids_train)
    else:
        edges_len_avg = 0
    return (bkd_dr, bkd_nid_groups, edges_len_avg, trigger_size, rst_bkdA)


# ----------------------------------------------------------------------------
# Pure-JAX reference (for correctness check) -- mirrors the PyTorch forward
# ----------------------------------------------------------------------------
def reference_forward(params, Ainput_trigger, topomask, id_output_temp,
                      *, layernum, topo_activation, topo_thrd):
    w_id, b_id, w, b = params

    def mlp(x, ws, bs):
        for l in range(layernum):
            x = x @ ws[l].T + bs[l][0]
            if l < layernum - 1:
                x = jnp.maximum(x, 0.0)
        return x

    id_out = jax.nn.sigmoid(mlp(id_output_temp, w_id, b_id))
    outs = []
    for g in range(Ainput_trigger.shape[0]):
        y = Ainput_trigger[g] * id_out
        y = mlp(y, w, b)
        if topo_activation == "relu":
            y = jnp.maximum(y, 0.0)
        elif topo_activation == "sigmoid":
            y = jax.nn.sigmoid(y)
        y = (y + y.T) / 2.0
        y = jnp.where(y > topo_thrd, 1.0, 0.0)
        outs.append(y * topomask[g])
    return jnp.stack(outs)


# ----------------------------------------------------------------------------
# Main
# ----------------------------------------------------------------------------
if __name__ == "__main__":
    # Small shapes consistent with the module.
    sq_dim = 32        # n
    layernum = 2       # -> 2 Linear(sq_dim, sq_dim) layers in each stack
    trigger_size = 3
    G = 2              # number of backdoored training graphs
    bkd_gids_train = [0, 1]
    topo_activation = "relu"
    topo_thrd = 0.5

    key = jax.random.PRNGKey(0)
    keys = jax.random.split(key, 8)

    # nn.Linear default init: U(-1/sqrt(fan_in), 1/sqrt(fan_in))
    bound = 1.0 / jnp.sqrt(jnp.float32(sq_dim))
    w_id = jax.random.uniform(keys[0], (layernum, sq_dim, sq_dim), jnp.float32, -bound, bound)
    b_id = jax.random.uniform(keys[1], (layernum, 1, sq_dim), jnp.float32, -bound, bound)
    w = jax.random.uniform(keys[2], (layernum, sq_dim, sq_dim), jnp.float32, -bound, bound)
    b = jax.random.uniform(keys[3], (layernum, 1, sq_dim), jnp.float32, -bound, bound)
    params = (w_id, b_id, w, b)

    # id_output_temp = torch.rand(n, n)  (deterministic substitute: jax.random)
    id_output_temp = jax.random.uniform(keys[4], (sq_dim, sq_dim), jnp.float32)

    # Per-graph inputs
    Ainput_trigger = jax.random.uniform(keys[5], (G, sq_dim, sq_dim), jnp.float32)
    topomask = (jax.random.uniform(keys[6], (G, sq_dim, sq_dim), jnp.float32) > 0.5
                ).astype(jnp.float32)

    result = generator_forward(
        params, Ainput_trigger, topomask, id_output_temp, bkd_gids_train,
        layernum=layernum, trigger_size=trigger_size,
        topo_activation=topo_activation, topo_thrd=topo_thrd)

    bkd_dr, bkd_nid_groups, edges_len_avg, tsz, rst_bkdA = result
    out_stack = jnp.stack([rst_bkdA[g] for g in bkd_gids_train])
    out_stack = jax.block_until_ready(out_stack)

    ref = reference_forward(params, Ainput_trigger, topomask, id_output_temp,
                            layernum=layernum, topo_activation=topo_activation,
                            topo_thrd=topo_thrd)
    ref = jax.block_until_ready(ref)

    assert out_stack.shape == (G, sq_dim, sq_dim)
    assert jnp.allclose(out_stack, ref, atol=1e-5, rtol=1e-5), "mismatch vs reference"
    assert tsz == trigger_size and float(edges_len_avg) == 0.0

    print("KERNEL_OK")
</pallas_src>

<mosaic_0001>
module attributes {stable_mosaic.version = 11 : i64} {
  func.func @generator_kernel(%arg0: memref<2x32x32xf32, #tpu.memory_space<vmem>>, %arg1: memref<2x32x32xf32, #tpu.memory_space<vmem>>, %arg2: memref<32x32xf32, #tpu.memory_space<vmem>>, %arg3: memref<2x32x32xf32, #tpu.memory_space<vmem>>, %arg4: memref<2x1x32xf32, #tpu.memory_space<vmem>>, %arg5: memref<2x32x32xf32, #tpu.memory_space<vmem>>, %arg6: memref<2x1x32xf32, #tpu.memory_space<vmem>>, %arg7: memref<2x32x32xf32, #tpu.memory_space<vmem>>) attributes {dimension_semantics = [], scalar_prefetch = 0 : i64, scratch_operands = 0 : i64, tpu.core_type = #tpu.core_type<tc>} {
    %c0 = arith.constant 0 : index
    %c0_0 = arith.constant 0 : index
    %0 = vector.load %arg2[%c0, %c0_0] : memref<32x32xf32, #tpu.memory_space<vmem>>, vector<32x32xf32>
    %c0_1 = arith.constant 0 : index
    %c0_2 = arith.constant 0 : index
    %c0_3 = arith.constant 0 : index
    %1 = vector.load %arg3[%c0_1, %c0_2, %c0_3] : memref<2x32x32xf32, #tpu.memory_space<vmem>>, vector<1x32x32xf32>
    %2 = vector.shape_cast %1 : vector<1x32x32xf32> to vector<32x32xf32>
    %cst = arith.constant dense<0.000000e+00> : vector<32x32xf32>
    %3 = tpu.matmul %0, %2, %cst {dimension_numbers = #tpu.dot_dimension_numbers<[1], [1], [0], [0], [0, 0, 1, 0], [], []>} : vector<32x32xf32>, vector<32x32xf32>, vector<32x32xf32> -> vector<32x32xf32>
    %c0_4 = arith.constant 0 : index
    %c0_5 = arith.constant 0 : index
    %c0_6 = arith.constant 0 : index
    %4 = vector.load %arg4[%c0_4, %c0_5, %c0_6] : memref<2x1x32xf32, #tpu.memory_space<vmem>>, vector<1x1x32xf32>
    %5 = vector.shape_cast %4 : vector<1x1x32xf32> to vector<1x32xf32>
    %6 = vector.broadcast %5 : vector<1x32xf32> to vector<32x32xf32>
    %7 = arith.addf %3, %6 : vector<32x32xf32>
    %cst_7 = arith.constant 0.000000e+00 : f32
    %8 = vector.broadcast %cst_7 : f32 to vector<32x32xf32>
    %9 = arith.maximumf %7, %8 : vector<32x32xf32>
    %c1 = arith.constant 1 : index
    %c0_8 = arith.constant 0 : index
    %c0_9 = arith.constant 0 : index
    %10 = vector.load %arg3[%c1, %c0_8, %c0_9] : memref<2x32x32xf32, #tpu.memory_space<vmem>>, vector<1x32x32xf32>
    %11 = vector.shape_cast %10 : vector<1x32x32xf32> to vector<32x32xf32>
    %cst_10 = arith.constant dense<0.000000e+00> : vector<32x32xf32>
    %12 = tpu.matmul %9, %11, %cst_10 {dimension_numbers = #tpu.dot_dimension_numbers<[1], [1], [0], [0], [0, 0, 1, 0], [], []>} : vector<32x32xf32>, vector<32x32xf32>, vector<32x32xf32> -> vector<32x32xf32>
    %c1_11 = arith.constant 1 : index
    %c0_12 = arith.constant 0 : index
    %c0_13 = arith.constant 0 : index
    %13 = vector.load %arg4[%c1_11, %c0_12, %c0_13] : memref<2x1x32xf32, #tpu.memory_space<vmem>>, vector<1x1x32xf32>
    %14 = vector.shape_cast %13 : vector<1x1x32xf32> to vector<1x32xf32>
    %15 = vector.broadcast %14 : vector<1x32xf32> to vector<32x32xf32>
    %16 = arith.addf %12, %15 : vector<32x32xf32>
    %17 = arith.negf %16 : vector<32x32xf32>
    %18 = math.exp %17 : vector<32x32xf32>
    %cst_14 = arith.constant 1.000000e+00 : f32
    %19 = vector.broadcast %cst_14 : f32 to vector<32x32xf32>
    %20 = arith.addf %19, %18 : vector<32x32xf32>
    %21 = arith.divf %19, %20 : vector<32x32xf32>
    %c0_15 = arith.constant 0 : index
    %c0_16 = arith.constant 0 : index
    %c0_17 = arith.constant 0 : index
    %22 = vector.load %arg0[%c0_15, %c0_16, %c0_17] : memref<2x32x32xf32, #tpu.memory_space<vmem>>, vector<1x32x32xf32>
    %23 = vector.shape_cast %22 : vector<1x32x32xf32> to vector<32x32xf32>
    %24 = arith.mulf %23, %21 : vector<32x32xf32>
    %c1_18 = arith.constant 1 : index
    %c0_19 = arith.constant 0 : index
    %c0_20 = arith.constant 0 : index
    %25 = vector.load %arg0[%c1_18, %c0_19, %c0_20] : memref<2x32x32xf32, #tpu.memory_space<vmem>>, vector<1x32x32xf32>
    %26 = vector.shape_cast %25 : vector<1x32x32xf32> to vector<32x32xf32>
    %27 = arith.mulf %26, %21 : vector<32x32xf32>
    %28 = tpu.concatenate %24, %27 in 0 : vector<32x32xf32>, vector<32x32xf32> -> vector<64x32xf32>
    %c0_21 = arith.constant 0 : index
    %c0_22 = arith.constant 0 : index
    %c0_23 = arith.constant 0 : index
    %29 = vector.load %arg5[%c0_21, %c0_22, %c0_23] : memref<2x32x32xf32, #tpu.memory_space<vmem>>, vector<1x32x32xf32>
    %30 = vector.shape_cast %29 : vector<1x32x32xf32> to vector<32x32xf32>
    %cst_24 = arith.constant dense<0.000000e+00> : vector<64x32xf32>
    %31 = tpu.matmul %28, %30, %cst_24 {dimension_numbers = #tpu.dot_dimension_numbers<[1], [1], [0], [0], [0, 0, 1, 0], [], []>} : vector<64x32xf32>, vector<32x32xf32>, vector<64x32xf32> -> vector<64x32xf32>
    %c0_25 = arith.constant 0 : index
    %c0_26 = arith.constant 0 : index
    %c0_27 = arith.constant 0 : index
    %32 = vector.load %arg6[%c0_25, %c0_26, %c0_27] : memref<2x1x32xf32, #tpu.memory_space<vmem>>, vector<1x1x32xf32>
    %33 = vector.shape_cast %32 : vector<1x1x32xf32> to vector<1x32xf32>
    %34 = vector.broadcast %33 : vector<1x32xf32> to vector<64x32xf32>
    %35 = arith.addf %31, %34 : vector<64x32xf32>
    %cst_28 = arith.constant 0.000000e+00 : f32
    %36 = vector.broadcast %cst_28 : f32 to vector<64x32xf32>
    %37 = arith.maximumf %35, %36 : vector<64x32xf32>
    %c1_29 = arith.constant 1 : index
    %c0_30 = arith.constant 0 : index
    %c0_31 = arith.constant 0 : index
    %38 = vector.load %arg5[%c1_29, %c0_30, %c0_31] : memref<2x32x32xf32, #tpu.memory_space<vmem>>, vector<1x32x32xf32>
    %39 = vector.shape_cast %38 : vector<1x32x32xf32> to vector<32x32xf32>
    %cst_32 = arith.constant dense<0.000000e+00> : vector<64x32xf32>
    %40 = tpu.matmul %37, %39, %cst_32 {dimension_numbers = #tpu.dot_dimension_numbers<[1], [1], [0], [0], [0, 0, 1, 0], [], []>} : vector<64x32xf32>, vector<32x32xf32>, vector<64x32xf32> -> vector<64x32xf32>
    %c1_33 = arith.constant 1 : index
    %c0_34 = arith.constant 0 : index
    %c0_35 = arith.constant 0 : index
    %41 = vector.load %arg6[%c1_33, %c0_34, %c0_35] : memref<2x1x32xf32, #tpu.memory_space<vmem>>, vector<1x1x32xf32>
    %42 = vector.shape_cast %41 : vector<1x1x32xf32> to vector<1x32xf32>
    %43 = vector.broadcast %42 : vector<1x32xf32> to vector<64x32xf32>
    %44 = arith.addf %40, %43 : vector<64x32xf32>
    %cst_36 = arith.constant 0.000000e+00 : f32
    %45 = vector.broadcast %cst_36 : f32 to vector<64x32xf32>
    %46 = arith.maximumf %44, %45 : vector<64x32xf32>
    %47 = vector.extract_strided_slice %46 {offsets = [0, 0], sizes = [32, 32], strides = [1, 1]} : vector<64x32xf32> to vector<32x32xf32>
    %48 = tpu.transpose %47, [1, 0] : vector<32x32xf32> -> vector<32x32xf32>
    %49 = arith.addf %47, %48 : vector<32x32xf32>
    %cst_37 = arith.constant 5.000000e-01 : f32
    %50 = vector.broadcast %cst_37 : f32 to vector<32x32xf32>
    %51 = arith.mulf %49, %50 : vector<32x32xf32>
    %cst_38 = arith.constant 5.000000e-01 : f32
    %52 = vector.broadcast %cst_38 : f32 to vector<32x32xf32>
    %53 = arith.cmpf ogt, %51, %52 : vector<32x32xf32>
    %c0_39 = arith.constant 0 : index
    %c0_40 = arith.constant 0 : index
    %c0_41 = arith.constant 0 : index
    %54 = vector.load %arg1[%c0_39, %c0_40, %c0_41] : memref<2x32x32xf32, #tpu.memory_space<vmem>>, vector<1x32x32xf32>
    %55 = vector.shape_cast %54 : vector<1x32x32xf32> to vector<32x32xf32>
    %cst_42 = arith.constant 0.000000e+00 : f32
    %56 = vector.broadcast %cst_42 : f32 to vector<32x32xf32>
    %57 = arith.select %53, %55, %56 : vector<32x32xi1>, vector<32x32xf32>
    %c0_43 = arith.constant 0 : index
    %c0_44 = arith.constant 0 : index
    %c0_45 = arith.constant 0 : index
    %58 = vector.load %arg7[%c0_43, %c0_44, %c0_45] : memref<2x32x32xf32, #tpu.memory_space<vmem>>, vector<1x32x32xf32>
    %59 = vector.shape_cast %58 : vector<1x32x32xf32> to vector<32x32xf32>
    %60 = vector.shape_cast %57 : vector<32x32xf32> to vector<1x32x32xf32>
    tpu.vector_store %arg7[%c0_43, %c0_44, %c0_45], %60 {strides = array<i32>} : memref<2x32x32xf32, #tpu.memory_space<vmem>>, vector<1x32x32xf32>,
    %61 = vector.extract_strided_slice %46 {offsets = [32, 0], sizes = [32, 32], strides = [1, 1]} : vector<64x32xf32> to vector<32x32xf32>
    %62 = tpu.transpose %61, [1, 0] : vector<32x32xf32> -> vector<32x32xf32>
    %63 = arith.addf %61, %62 : vector<32x32xf32>
    %cst_46 = arith.constant 5.000000e-01 : f32
    %64 = vector.broadcast %cst_46 : f32 to vector<32x32xf32>
    %65 = arith.mulf %63, %64 : vector<32x32xf32>
    %cst_47 = arith.constant 5.000000e-01 : f32
    %66 = vector.broadcast %cst_47 : f32 to vector<32x32xf32>
    %67 = arith.cmpf ogt, %65, %66 : vector<32x32xf32>
    %c1_48 = arith.constant 1 : index
    %c0_49 = arith.constant 0 : index
    %c0_50 = arith.constant 0 : index
    %68 = vector.load %arg1[%c1_48, %c0_49, %c0_50] : memref<2x32x32xf32, #tpu.memory_space<vmem>>, vector<1x32x32xf32>
    %69 = vector.shape_cast %68 : vector<1x32x32xf32> to vector<32x32xf32>
    %cst_51 = arith.constant 0.000000e+00 : f32
    %70 = vector.broadcast %cst_51 : f32 to vector<32x32xf32>
    %71 = arith.select %67, %69, %70 : vector<32x32xi1>, vector<32x32xf32>
    %c1_52 = arith.constant 1 : index
    %c0_53 = arith.constant 0 : index
    %c0_54 = arith.constant 0 : index
    %72 = vector.load %arg7[%c1_52, %c0_53, %c0_54] : memref<2x32x32xf32, #tpu.memory_space<vmem>>, vector<1x32x32xf32>
    %73 = vector.shape_cast %72 : vector<1x32x32xf32> to vector<32x32xf32>
    %74 = vector.shape_cast %71 : vector<32x32xf32> to vector<1x32x32xf32>
    tpu.vector_store %arg7[%c1_52, %c0_53, %c0_54], %74 {strides = array<i32>} : memref<2x32x32xf32, #tpu.memory_space<vmem>>, vector<1x32x32xf32>,
    return
  }
}

</mosaic_0001>

<llo_original>
// kernel: tpu_custom_call.1
$region0: #{tpu_custom_call.1}
  #allocation0 [shape = 'u32[]', space=smem, size = 0x4, offset = 0x4, fixed_abs, tag = 'smem constant byte address 0x4 - core index']
  #allocation1 [shape = 'u32[72,128]{1,0:T(1,128)}', space=vmem, size = 0x9000, scoped, tag = 'internal scratch']
  %s0 = inlined_call_operand.hbm [shape: f32[2,32,32], index: 0, kind: input, shape index: {}]
  %s1 = inlined_call_operand.hbm [shape: f32[2,32,32], index: 1, kind: input, shape index: {}]
  %s2 = inlined_call_operand.hbm [shape: f32[32,32], index: 2, kind: input, shape index: {}]
  %s3 = inlined_call_operand.hbm [shape: f32[2,32,32], index: 3, kind: input, shape index: {}]
  %s4 = inlined_call_operand.vmem [shape: f32[2,1,32], index: 4, kind: input, shape index: {}]
  %s5 = inlined_call_operand.hbm [shape: f32[2,32,32], index: 5, kind: input, shape index: {}]
  %s6 = inlined_call_operand.vmem [shape: f32[2,1,32], index: 6, kind: input, shape index: {}]
  %s7 = inlined_call_operand.hbm [shape: f32[2,32,32], index: 7, kind: output, shape index: {}]
  %s8 = sld [smem:[#allocation0]]
  $region58: #{tpu_custom_call.1} parent=0
    _
  %s10 = ssub.s32 1, %s8
  %s11 = scalar_select 0, %s10, %s8
  $region1: #{tpu_custom_call.1} parent=0
    #allocation2 [shape = 'u8[32768]{0}', space=vmem, size = 0x8000, scoped, tag = 'input window, operand 0, single buffered']
    #allocation3 [shape = 's32[1]{0}', space=sflag, size = 0x4, scoped, tag = 'scoped memory for tpu_custom_call.1']
    #allocation4 [shape = 's32[1]{0}', space=sflag, size = 0x4, scoped, tag = 'scoped memory for tpu_custom_call.1']
    #allocation5 [shape = 'u8[32768]{0}', space=vmem, size = 0x8000, scoped, tag = 'input window, operand 1, single buffered']
    #allocation6 [shape = 's32[1]{0}', space=sflag, size = 0x4, scoped, tag = 'scoped memory for tpu_custom_call.1']
    #allocation7 [shape = 'u8[16384]{0}', space=vmem, size = 0x4000, scoped, tag = 'input window, operand 2, single buffered']
    #allocation8 [shape = 'u8[32768]{0}', space=vmem, size = 0x8000, scoped, tag = 'input window, operand 3, single buffered']
    #allocation9 [shape = 's32[1]{0}', space=sflag, size = 0x4, scoped, tag = 'scoped memory for tpu_custom_call.1']
    #allocation10 [shape = 'u8[32768]{0}', space=vmem, size = 0x8000, scoped, tag = 'input window, operand 5, single buffered']
    #allocation11 [shape = 'u8[32768]{0}', space=vmem, size = 0x8000, scoped, tag = 'output window, operand 0, single buffered']
    %12 = vsyncpa [#allocation3], 0
    %13 = vsyncpa [#allocation6], 0
    %14 = vsyncpa [#allocation9], 0
    %15 = vsyncpa [#allocation4], 0
    // Predicated region
    $region2: #{tpu_custom_call.1} parent=1 // pred_check
      _
    $region3: #{tpu_custom_call.1} parent=1 // pred_check_branch
      %17 = sbr.rel (0) target = $region5
    $region4: #{tpu_custom_call.1} parent=1 // pred_region
      %19 = vsyncadd [#allocation3], 0
      %s20 = sshll.u32 %s0, 4
      %s21 = int_to_ptr.hbm [resolvable:$true] %s20
      %s22 = sshll.u32 [#allocation2], 4
      %s23 = int_to_ptr.vmem [resolvable:$true] %s22
      %28 = dma.hbm_to_vmem [thread:$0]  %s21, 1024, %s23, [#allocation3], 128, 128, 8
    $region5: #{tpu_custom_call.1} parent=1 // pred_fallthru
      _
    // Predicated region
    $region6: #{tpu_custom_call.1} parent=1 // pred_check
      _
    $region7: #{tpu_custom_call.1} parent=1 // pred_check_branch
      %30 = sbr.rel (0) target = $region9
    $region8: #{tpu_custom_call.1} parent=1 // pred_region
      %32 = vsyncadd [#allocation6], 0
      %s33 = sshll.u32 %s1, 4
      %s34 = int_to_ptr.hbm [resolvable:$true] %s33
      %s35 = sshll.u32 [#allocation5], 4
      %s36 = int_to_ptr.vmem [resolvable:$true] %s35
      %41 = dma.hbm_to_vmem [thread:$0]  %s34, 1024, %s36, [#allocation6], 128, 128, 8
    $region9: #{tpu_custom_call.1} parent=1 // pred_fallthru
      _
    // Predicated region
    $region10: #{tpu_custom_call.1} parent=1 // pred_check
      _
    $region11: #{tpu_custom_call.1} parent=1 // pred_check_branch
      %43 = sbr.rel (0) target = $region13
    $region12: #{tpu_custom_call.1} parent=1 // pred_region
      %45 = vsyncadd [#allocation6], 0
      %s46 = sshll.u32 %s2, 4
      %s47 = int_to_ptr.hbm [resolvable:$true] %s46
      %s48 = sshll.u32 [#allocation7], 4
      %s49 = int_to_ptr.vmem [resolvable:$true] %s48
      %54 = dma.hbm_to_vmem [thread:$0]  %s47, 512, %s49, [#allocation6], 128, 128, 8
    $region13: #{tpu_custom_call.1} parent=1 // pred_fallthru
      _
    // Predicated region
    $region14: #{tpu_custom_call.1} parent=1 // pred_check
      _
    $region15: #{tpu_custom_call.1} parent=1 // pred_check_branch
      %56 = sbr.rel (0) target = $region17
    $region16: #{tpu_custom_call.1} parent=1 // pred_region
      %58 = vsyncadd [#allocation9], 0
      %s59 = sshll.u32 %s3, 4
      %s60 = int_to_ptr.hbm [resolvable:$true] %s59
      %s61 = sshll.u32 [#allocation8], 4
      %s62 = int_to_ptr.vmem [resolvable:$true] %s61
      %67 = dma.hbm_to_vmem [thread:$0]  %s60, 1024, %s62, [#allocation9], 128, 128, 8
    $region17: #{tpu_custom_call.1} parent=1 // pred_fallthru
      _
    // Predicated region
    $region18: #{tpu_custom_call.1} parent=1 // pred_check
      _
    $region19: #{tpu_custom_call.1} parent=1 // pred_check_branch
      %69 = sbr.rel (0) target = $region21
    $region20: #{tpu_custom_call.1} parent=1 // pred_region
      _
    $region21: #{tpu_custom_call.1} parent=1 // pred_fallthru
      _
    // Predicated region
    $region22: #{tpu_custom_call.1} parent=1 // pred_check
      _
    $region23: #{tpu_custom_call.1} parent=1 // pred_check_branch
      %71 = sbr.rel (0) target = $region25
    $region24: #{tpu_custom_call.1} parent=1 // pred_region
      %73 = vsyncadd [#allocation9], 0
      %s74 = sshll.u32 %s5, 4
      %s75 = int_to_ptr.hbm [resolvable:$true] %s74
      %s76 = sshll.u32 [#allocation10], 4
      %s77 = int_to_ptr.vmem [resolvable:$true] %s76
      %82 = dma.hbm_to_vmem [thread:$0]  %s75, 1024, %s77, [#allocation9], 128, 128, 8
    $region25: #{tpu_custom_call.1} parent=1 // pred_fallthru
      _
    // Predicated region
    $region26: #{tpu_custom_call.1} parent=1 // pred_check
      _
    $region27: #{tpu_custom_call.1} parent=1 // pred_check_branch
      %84 = sbr.rel (0) target = $region29
    $region28: #{tpu_custom_call.1} parent=1 // pred_region
      _
    $region29: #{tpu_custom_call.1} parent=1 // pred_fallthru
      _
    // Predicated region
    $region30: #{tpu_custom_call.1} parent=1 // pred_check
      _
    $region31: #{tpu_custom_call.1} parent=1 // pred_check_branch
      %86 = sbr.rel (0) target = $region33
    $region32: #{tpu_custom_call.1} parent=1 // pred_region
      %88 = dma.done [#allocation3], 1024
    $region33: #{tpu_custom_call.1} parent=1 // pred_fallthru
      _
    // Predicated region
    $region34: #{tpu_custom_call.1} parent=1 // pred_check
      _
    $region35: #{tpu_custom_call.1} parent=1 // pred_check_branch
      %90 = sbr.rel (0) target = $region37
    $region36: #{tpu_custom_call.1} parent=1 // pred_region
      %92 = dma.done [#allocation6], 1024
    $region37: #{tpu_custom_call.1} parent=1 // pred_fallthru
      _
    // Predicated region
    $region38: #{tpu_custom_call.1} parent=1 // pred_check
      _
    $region39: #{tpu_custom_call.1} parent=1 // pred_check_branch
      %94 = sbr.rel (0) target = $region41
    $region40: #{tpu_custom_call.1} parent=1 // pred_region
      %96 = dma.done [#allocation6], 512
    $region41: #{tpu_custom_call.1} parent=1 // pred_fallthru
      _
    // Predicated region
    $region42: #{tpu_custom_call.1} parent=1 // pred_check
      _
    $region43: #{tpu_custom_call.1} parent=1 // pred_check_branch
      %98 = sbr.rel (0) target = $region45
    $region44: #{tpu_custom_call.1} parent=1 // pred_region
      %100 = dma.done [#allocation9], 1024
    $region45: #{tpu_custom_call.1} parent=1 // pred_fallthru
      _
    // Predicated region
    $region46: #{tpu_custom_call.1} parent=1 // pred_check
      _
    $region47: #{tpu_custom_call.1} parent=1 // pred_check_branch
      %102 = sbr.rel (0) target = $region49
    $region48: #{tpu_custom_call.1} parent=1 // pred_region
      %104 = dma.done [#allocation9], 1024
    $region49: #{tpu_custom_call.1} parent=1 // pred_fallthru
      _
    %v105 = vld [vmem:[#allocation7] sm:$0xff]
    %v106 = vld [vmem:[#allocation7 + $0x8] sm:$0xff]
    %v107 = vld [vmem:[#allocation7 + $0x10] sm:$0xff]
    %v108 = vld [vmem:[#allocation7 + $0x18] sm:$0xff]
    %v109 = vld [vmem:[#allocation8] sm:$0xff]
    %v110 = vld [vmem:[#allocation8 + $0x8] sm:$0xff]
    %v111 = vld [vmem:[#allocation8 + $0x10] sm:$0xff]
    %v112 = vld [vmem:[#allocation8 + $0x18] sm:$0xff]
    %v113 = vld [vmem:[%s4] sm:$0x1]
    %v115 = vperm.slane %v113, 0
    %vm117 = vcmask 261120
    %v119 = vsel %vm117, %v105, 0
    %v122 = vsel %vm117, %v106, 0
    %v125 = vsel %vm117, %v107, 0
    %v128 = vsel %vm117, %v108, 0
    %v131 = vsel %vm117, %v109, 0
    %v134 = vsel %vm117, %v110, 0
    %v137 = vsel %vm117, %v111, 0
    %v140 = vsel %vm117, %v112, 0
    %142 = vmatpush.xpose.msra.mxu0 0.0
    %143 = vmatpush.xpose.msra.mxu0 0.0
    %144 = vmatpush.xpose.msra.mxu0 0.0
    %145 = vmatpush.xpose.msra.mxu0 0.0
    %146 = vmatpush.xpose.msra.mxu0 0.0
    %147 = vmatpush.xpose.msra.mxu0 0.0
    %148 = vmatpush.xpose.msra.mxu0 0.0
    %149 = vmatpush.xpose.msra.mxu0 0.0
    %150 = vmatpush.xpose.msra.mxu0 0.0
    %151 = vmatpush.xpose.msra.mxu0 0.0
    %152 = vmatpush.xpose.msra.mxu0 0.0
    %153 = vmatpush.xpose.msra.mxu0 0.0
    %154 = vmatpush.xpose.msra.mxu0 %v140
    %155 = vmatpush.xpose.msra.mxu0 %v137
    %156 = vmatpush.xpose.msra.mxu0 %v134
    %157 = vmatpush.xpose.msra.mxu0 %v131
    %158 = vmatmul.f32.gmra.mxu0 %v119
    %v159 = vpop.f32.mrf.mxu0
    %v160 = vadd.f32 %v115, %v159
    %161 = vmatmul.f32.gmra.mxu0 %v122
    %v162 = vpop.f32.mrf.mxu0
    %v163 = vadd.f32 %v115, %v162
    %164 = vmatmul.f32.gmra.mxu0 %v125
    %v165 = vpop.f32.mrf.mxu0
    %v166 = vadd.f32 %v115, %v165
    %167 = vmatmul.f32.gmra.mxu0 %v128
    %v168 = vpop.f32.mrf.mxu0
    %v169 = vadd.f32 %v115, %v168
    %170 = vdwg.mxu0
    %v171 = vmax.f32 %v160, 0.0
    %v172 = vmax.f32 %v163, 0.0
    %v173 = vmax.f32 %v166, 0.0
    %v174 = vmax.f32 %v169, 0.0
    %s175 = scalar_lea.vmem [#allocation8], 32
    %v176 = vld [vmem:[%s175] sm:$0xff]
    %v177 = vld [vmem:[%s175 + $0x8] sm:$0xff]
    %v178 = vld [vmem:[%s175 + $0x10] sm:$0xff]
    %v179 = vld [vmem:[%s175 + $0x18] sm:$0xff]
    %s180 = scalar_lea.vmem %s4, 1
    %v181 = vld [vmem:[%s180] sm:$0x1]
    %v183 = vperm.slane %v181, 0
    %v186 = vsel %vm117, %v171, 0
    %v189 = vsel %vm117, %v172, 0
    %v192 = vsel %vm117, %v173, 0
    %v195 = vsel %vm117, %v174, 0
    %v198 = vsel %vm117, %v176, 0
    %v201 = vsel %vm117, %v177, 0
    %v204 = vsel %vm117, %v178, 0
    %v207 = vsel %vm117, %v179, 0
    %209 = vmatpush.xpose.msra.mxu0 0.0
    %210 = vmatpush.xpose.msra.mxu0 0.0
    %211 = vmatpush.xpose.msra.mxu0 0.0
    %212 = vmatpush.xpose.msra.mxu0 0.0
    %213 = vmatpush.xpose.msra.mxu0 0.0
    %214 = vmatpush.xpose.msra.mxu0 0.0
    %215 = vmatpush.xpose.msra.mxu0 0.0
    %216 = vmatpush.xpose.msra.mxu0 0.0
    %217 = vmatpush.xpose.msra.mxu0 0.0
    %218 = vmatpush.xpose.msra.mxu0 0.0
    %219 = vmatpush.xpose.msra.mxu0 0.0
    %220 = vmatpush.xpose.msra.mxu0 0.0
    %221 = vmatpush.xpose.msra.mxu0 %v207
    %222 = vmatpush.xpose.msra.mxu0 %v204
    %223 = vmatpush.xpose.msra.mxu0 %v201
    %224 = vmatpush.xpose.msra.mxu0 %v198
    %225 = vmatmul.f32.gmra.mxu0 %v186
    %v226 = vpop.f32.mrf.mxu0
    %v227 = vadd.f32 %v183, %v226
    %228 = vmatmul.f32.gmra.mxu0 %v189
    %v229 = vpop.f32.mrf.mxu0
    %v230 = vadd.f32 %v183, %v229
    %231 = vmatmul.f32.gmra.mxu0 %v192
    %v232 = vpop.f32.mrf.mxu0
    %v233 = vadd.f32 %v183, %v232
    %234 = vmatmul.f32.gmra.mxu0 %v195
    %v235 = vpop.f32.mrf.mxu0
    %v236 = vadd.f32 %v183, %v235
    %237 = vdwg.mxu0
    %v238 = vxor.u32 %v227, 2147483648
    %v239 = vxor.u32 %v230, 2147483648
    %v240 = vxor.u32 %v233, 2147483648
    %v241 = vxor.u32 %v236, 2147483648
    %v242 = vmul.f32 %v238, 1.442695
    %v243 = vpow.pop %v242
    %v244 = vmul.f32 %v239, 1.442695
    %v245 = vpow.pop %v244
    %v246 = vmul.f32 %v240, 1.442695
    %v247 = vpow.pop %v246
    %v248 = vmul.f32 %v241, 1.442695
    %v249 = vpow.pop %v248
    %v250 = vadd.f32 %v243, 1.0
    %v251 = vadd.f32 %v245, 1.0
    %v252 = vadd.f32 %v247, 1.0
    %v253 = vadd.f32 %v249, 1.0
    %v254 = vrcp.pop %v250
    %v255 = vmul.f32 %v250, %v254
    %v256 = vsub.f32 1.0, %v255
    %v257 = vmul.f32 %v254, %v256
    %v258 = vadd.f32 %v254, %v257
    %vm259 = vweird.f32 %v250
    %vm260 = vweird.f32 %v254
    %vm261 = vmor %vm259, %vm260
    %v262 = vsel %vm261, %v254, %v258
    %v263 = vand.u32 2147483647, %v250
    %vm264 = vcmp.eq.f32.partialorder %v263, 8.507059e+37
    %v265 = vand.u32 %v250, 2147483648
    %v266 = vor.u32 1.1754944e-38, %v265
    %v267 = vsel %vm264, %v266, %v262
    %v268 = vmul.f32 1.0, %v267
    %v269 = vrcp.pop %v251
    %v270 = vmul.f32 %v251, %v269
    %v271 = vsub.f32 1.0, %v270
    %v272 = vmul.f32 %v269, %v271
    %v273 = vadd.f32 %v269, %v272
    %vm274 = vweird.f32 %v251
    %vm275 = vweird.f32 %v269
    %vm276 = vmor %vm274, %vm275
    %v277 = vsel %vm276, %v269, %v273
    %v278 = vand.u32 2147483647, %v251
    %vm279 = vcmp.eq.f32.partialorder %v278, 8.507059e+37
    %v280 = vand.u32 %v251, 2147483648
    %v281 = vor.u32 1.1754944e-38, %v280
    %v282 = vsel %vm279, %v281, %v277
    %v283 = vmul.f32 1.0, %v282
    %v284 = vrcp.pop %v252
    %v285 = vmul.f32 %v252, %v284
    %v286 = vsub.f32 1.0, %v285
    %v287 = vmul.f32 %v284, %v286
    %v288 = vadd.f32 %v284, %v287
    %vm289 = vweird.f32 %v252
    %vm290 = vweird.f32 %v284
    %vm291 = vmor %vm289, %vm290
    %v292 = vsel %vm291, %v284, %v288
    %v293 = vand.u32 2147483647, %v252
    %vm294 = vcmp.eq.f32.partialorder %v293, 8.507059e+37
    %v295 = vand.u32 %v252, 2147483648
    %v296 = vor.u32 1.1754944e-38, %v295
    %v297 = vsel %vm294, %v296, %v292
    %v298 = vmul.f32 1.0, %v297
    %v299 = vrcp.pop %v253
    %v300 = vmul.f32 %v253, %v299
    %v301 = vsub.f32 1.0, %v300
    %v302 = vmul.f32 %v299, %v301
    %v303 = vadd.f32 %v299, %v302
    %vm304 = vweird.f32 %v253
    %vm305 = vweird.f32 %v299
    %vm306 = vmor %vm304, %vm305
    %v307 = vsel %vm306, %v299, %v303
    %v308 = vand.u32 2147483647, %v253
    %vm309 = vcmp.eq.f32.partialorder %v308, 8.507059e+37
    %v310 = vand.u32 %v253, 2147483648
    %v311 = vor.u32 1.1754944e-38, %v310
    %v312 = vsel %vm309, %v311, %v307
    %v313 = vmul.f32 1.0, %v312
    %v314 = vld [vmem:[#allocation2] sm:$0xff]
    %v315 = vld [vmem:[#allocation2 + $0x8] sm:$0xff]
    %v316 = vld [vmem:[#allocation2 + $0x10] sm:$0xff]
    %v317 = vld [vmem:[#allocation2 + $0x18] sm:$0xff]
    %v318 = vmul.f32 %v314, %v268
    %v319 = vmul.f32 %v315, %v283
    %v320 = vmul.f32 %v316, %v298
    %v321 = vmul.f32 %v317, %v313
    %s322 = scalar_lea.vmem [#allocation2], 32
    %v323 = vld [vmem:[%s322] sm:$0xff]
    %v324 = vld [vmem:[%s322 + $0x8] sm:$0xff]
    %v325 = vld [vmem:[%s322 + $0x10] sm:$0xff]
    %v326 = vld [vmem:[%s322 + $0x18] sm:$0xff]
    %v327 = vmul.f32 %v323, %v268
    %v328 = vmul.f32 %v324, %v283
    %v329 = vmul.f32 %v325, %v298
    %v330 = vmul.f32 %v326, %v313
    %v331 = vld [vmem:[#allocation10] sm:$0xff]
    %v332 = vld [vmem:[#allocation10 + $0x8] sm:$0xff]
    %v333 = vld [vmem:[#allocation10 + $0x10] sm:$0xff]
    %v334 = vld [vmem:[#allocation10 + $0x18] sm:$0xff]
    %v335 = vld [vmem:[%s6] sm:$0x1]
    %v337 = vperm.slane %v335, 0
    %v340 = vsel %vm117, %v318, 0
    %v343 = vsel %vm117, %v319, 0
    %v346 = vsel %vm117, %v320, 0
    %v349 = vsel %vm117, %v321, 0
    %v352 = vsel %vm117, %v327, 0
    %v355 = vsel %vm117, %v328, 0
    %v358 = vsel %vm117, %v329, 0
    %v361 = vsel %vm117, %v330, 0
    %v364 = vsel %vm117, %v331, 0
    %v367 = vsel %vm117, %v332, 0
    %v370 = vsel %vm117, %v333, 0
    %v373 = vsel %vm117, %v334, 0
    %375 = vmatpush.xpose.msra.mxu0 0.0
    %376 = vmatpush.xpose.msra.mxu0 0.0
    %377 = vmatpush.xpose.msra.mxu0 0.0
    %378 = vmatpush.xpose.msra.mxu0 0.0
    %379 = vmatpush.xpose.msra.mxu0 0.0
    %380 = vmatpush.xpose.msra.mxu0 0.0
    %381 = vmatpush.xpose.msra.mxu0 0.0
    %382 = vmatpush.xpose.msra.mxu0 0.0
    %383 = vmatpush.xpose.msra.mxu0 0.0
    %384 = vmatpush.xpose.msra.mxu0 0.0
    %385 = vmatpush.xpose.msra.mxu0 0.0
    %386 = vmatpush.xpose.msra.mxu0 0.0
    %387 = vmatpush.xpose.msra.mxu0 %v373
    %388 = vmatpush.xpose.msra.mxu0 %v370
    %389 = vmatpush.xpose.msra.mxu0 %v367
    %390 = vmatpush.xpose.msra.mxu0 %v364
    %391 = vmatmul.f32.gmra.mxu0 %v340
    %v392 = vpop.f32.mrf.mxu0
    %v393 = vadd.f32 %v337, %v392
    %394 = vmatmul.f32.gmra.mxu0 %v343
    %v395 = vpop.f32.mrf.mxu0
    %v396 = vadd.f32 %v337, %v395
    %397 = vmatmul.f32.gmra.mxu0 %v346
    %v398 = vpop.f32.mrf.mxu0
    %v399 = vadd.f32 %v337, %v398
    %400 = vmatmul.f32.gmra.mxu0 %v349
    %v401 = vpop.f32.mrf.mxu0
    %v402 = vadd.f32 %v337, %v401
    %403 = vmatmul.f32.gmra.mxu0 %v352
    %v404 = vpop.f32.mrf.mxu0
    %v405 = vadd.f32 %v337, %v404
    %406 = vmatmul.f32.gmra.mxu0 %v355
    %v407 = vpop.f32.mrf.mxu0
    %v408 = vadd.f32 %v337, %v407
    %409 = vmatmul.f32.gmra.mxu0 %v358
    %v410 = vpop.f32.mrf.mxu0
    %v411 = vadd.f32 %v337, %v410
    %412 = vmatmul.f32.gmra.mxu0 %v361
    %v413 = vpop.f32.mrf.mxu0
    %v414 = vadd.f32 %v337, %v413
    %415 = vdwg.mxu0
    %v416 = vmax.f32 %v393, 0.0
    %v417 = vmax.f32 %v396, 0.0
    %v418 = vmax.f32 %v399, 0.0
    %v419 = vmax.f32 %v402, 0.0
    %v420 = vmax.f32 %v405, 0.0
    %v421 = vmax.f32 %v408, 0.0
    %v422 = vmax.f32 %v411, 0.0
    %v423 = vmax.f32 %v414, 0.0
    %s424 = scalar_lea.vmem [#allocation10], 32
    %v425 = vld [vmem:[%s424] sm:$0xff]
    %v426 = vld [vmem:[%s424 + $0x8] sm:$0xff]
    %v427 = vld [vmem:[%s424 + $0x10] sm:$0xff]
    %v428 = vld [vmem:[%s424 + $0x18] sm:$0xff]
    %s429 = scalar_lea.vmem %s6, 1
    %v430 = vld [vmem:[%s429] sm:$0x1]
    %v432 = vperm.slane %v430, 0
    %v435 = vsel %vm117, %v416, 0
    %v438 = vsel %vm117, %v417, 0
    %v441 = vsel %vm117, %v418, 0
    %v444 = vsel %vm117, %v419, 0
    %v447 = vsel %vm117, %v420, 0
    %v450 = vsel %vm117, %v421, 0
    %v453 = vsel %vm117, %v422, 0
    %v456 = vsel %vm117, %v423, 0
    %v459 = vsel %vm117, %v425, 0
    %v462 = vsel %vm117, %v426, 0
    %v465 = vsel %vm117, %v427, 0
    %v468 = vsel %vm117, %v428, 0
    %470 = vmatpush.xpose.msra.mxu0 0.0
    %471 = vmatpush.xpose.msra.mxu0 0.0
    %472 = vmatpush.xpose.msra.mxu0 0.0
    %473 = vmatpush.xpose.msra.mxu0 0.0
    %474 = vmatpush.xpose.msra.mxu0 0.0
    %475 = vmatpush.xpose.msra.mxu0 0.0
    %476 = vmatpush.xpose.msra.mxu0 0.0
    %477 = vmatpush.xpose.msra.mxu0 0.0
    %478 = vmatpush.xpose.msra.mxu0 0.0
    %479 = vmatpush.xpose.msra.mxu0 0.0
    %480 = vmatpush.xpose.msra.mxu0 0.0
    %481 = vmatpush.xpose.msra.mxu0 0.0
    %482 = vmatpush.xpose.msra.mxu0 %v468
    %483 = vmatpush.xpose.msra.mxu0 %v465
    %484 = vmatpush.xpose.msra.mxu0 %v462
    %485 = vmatpush.xpose.msra.mxu0 %v459
    %486 = vmatmul.f32.gmra.mxu0 %v435
    %v487 = vpop.f32.mrf.mxu0
    %v488 = vadd.f32 %v432, %v487
    %489 = vmatmul.f32.gmra.mxu0 %v438
    %v490 = vpop.f32.mrf.mxu0
    %v491 = vadd.f32 %v432, %v490
    %492 = vmatmul.f32.gmra.mxu0 %v441
    %v493 = vpop.f32.mrf.mxu0
    %v494 = vadd.f32 %v432, %v493
    %495 = vmatmul.f32.gmra.mxu0 %v444
    %v496 = vpop.f32.mrf.mxu0
    %v497 = vadd.f32 %v432, %v496
    %498 = vmatmul.f32.gmra.mxu0 %v447
    %v499 = vpop.f32.mrf.mxu0
    %v500 = vadd.f32 %v432, %v499
    %501 = vmatmul.f32.gmra.mxu0 %v450
    %v502 = vpop.f32.mrf.mxu0
    %v503 = vadd.f32 %v432, %v502
    %504 = vmatmul.f32.gmra.mxu0 %v453
    %v505 = vpop.f32.mrf.mxu0
    %v506 = vadd.f32 %v432, %v505
    %507 = vmatmul.f32.gmra.mxu0 %v456
    %v508 = vpop.f32.mrf.mxu0
    %v509 = vadd.f32 %v432, %v508
    %510 = vdwg.mxu0
    %v511 = vmax.f32 %v488, 0.0
    %v512 = vmax.f32 %v491, 0.0
    %v513 = vmax.f32 %v494, 0.0
    %v514 = vmax.f32 %v497, 0.0
    %v515 = vmax.f32 %v500, 0.0
    %v516 = vmax.f32 %v503, 0.0
    %v517 = vmax.f32 %v506, 0.0
    %v518 = vmax.f32 %v509, 0.0
    %519 = vxpose.xlu0.b32.start [1/16] %v511, 128
    %520 = vxpose.xlu0.b32.cont [2/16] %v512, 128
    %521 = vxpose.xlu0.b32.cont [3/16] %v513, 128
    %522 = vxpose.xlu0.b32.cont [4/16] %v514, 128
    %523 = vxpose.xlu0.b32.cont [5/16] 0.0, 128
    %524 = vxpose.xlu0.b32.cont [6/16] 0.0, 128
    %525 = vxpose.xlu0.b32.cont [7/16] 0.0, 128
    %526 = vxpose.xlu0.b32.cont [8/16] 0.0, 128
    %527 = vxpose.xlu0.b32.cont [9/16] 0.0, 128
    %528 = vxpose.xlu0.b32.cont [10/16] 0.0, 128
    %529 = vxpose.xlu0.b32.cont [11/16] 0.0, 128
    %530 = vxpose.xlu0.b32.cont [12/16] 0.0, 128
    %531 = vxpose.xlu0.b32.cont [13/16] 0.0, 128
    %532 = vxpose.xlu0.b32.cont [14/16] 0.0, 128
    %533 = vxpose.xlu0.b32.cont [15/16] 0.0, 128
    %534 = vxpose.xlu0.b32.end [16/16] 0.0, 128
    %v535 = vpop.trf.xlu0
    %v536 = vpop.trf.xlu0
    %v537 = vpop.trf.xlu0
    %v538 = vpop.trf.xlu0
    %v539 = vpop.trf.xlu0
    %v540 = vpop.trf.xlu0
    %v541 = vpop.trf.xlu0
    %v542 = vpop.trf.xlu0
    %v543 = vpop.trf.xlu0
    %v544 = vpop.trf.xlu0
    %v545 = vpop.trf.xlu0
    %v546 = vpop.trf.xlu0
    %v547 = vpop.trf.xlu0
    %v548 = vpop.trf.xlu0
    %v549 = vpop.trf.xlu0
    %v550 = vpop.trf.xlu0
    %v551 = vadd.f32 %v511, %v535
    %v552 = vadd.f32 %v512, %v536
    %v553 = vadd.f32 %v513, %v537
    %v554 = vadd.f32 %v514, %v538
    %v555 = vmul.f32 %v551, 0.5
    %v556 = vmul.f32 %v552, 0.5
    %v557 = vmul.f32 %v553, 0.5
    %v558 = vmul.f32 %v554, 0.5
    %vm559 = vcmp.gt.f32.partialorder %v555, 0.5
    %vm560 = vcmp.gt.f32.partialorder %v556, 0.5
    %vm561 = vcmp.gt.f32.partialorder %v557, 0.5
    %vm562 = vcmp.gt.f32.partialorder %v558, 0.5
    %v563 = vld [vmem:[#allocation5] sm:$0xff]
    %v564 = vld [vmem:[#allocation5 + $0x8] sm:$0xff]
    %v565 = vld [vmem:[#allocation5 + $0x10] sm:$0xff]
    %v566 = vld [vmem:[#allocation5 + $0x18] sm:$0xff]
    %v567 = vsel %vm559, %v563, 0.0
    %v568 = vsel %vm560, %v564, 0.0
    %v569 = vsel %vm561, %v565, 0.0
    %v570 = vsel %vm562, %v566, 0.0
    %571 = vst.msk [vmem:[#allocation11] sm:$0xff] %vm117, %v567
    %572 = vst.msk [vmem:[#allocation11 + $0x8] sm:$0xff] %vm117, %v568
    %573 = vst.msk [vmem:[#allocation11 + $0x10] sm:$0xff] %vm117, %v569
    %574 = vst.msk [vmem:[#allocation11 + $0x18] sm:$0xff] %vm117, %v570
    %575 = vxpose.xlu0.b32.start [1/16] %v515, 128
    %576 = vxpose.xlu0.b32.cont [2/16] %v516, 128
    %577 = vxpose.xlu0.b32.cont [3/16] %v517, 128
    %578 = vxpose.xlu0.b32.cont [4/16] %v518, 128
    %579 = vxpose.xlu0.b32.cont [5/16] 0.0, 128
    %580 = vxpose.xlu0.b32.cont [6/16] 0.0, 128
    %581 = vxpose.xlu0.b32.cont [7/16] 0.0, 128
    %582 = vxpose.xlu0.b32.cont [8/16] 0.0, 128
    %583 = vxpose.xlu0.b32.cont [9/16] 0.0, 128
    %584 = vxpose.xlu0.b32.cont [10/16] 0.0, 128
    %585 = vxpose.xlu0.b32.cont [11/16] 0.0, 128
    %586 = vxpose.xlu0.b32.cont [12/16] 0.0, 128
    %587 = vxpose.xlu0.b32.cont [13/16] 0.0, 128
    %588 = vxpose.xlu0.b32.cont [14/16] 0.0, 128
    %589 = vxpose.xlu0.b32.cont [15/16] 0.0, 128
    %590 = vxpose.xlu0.b32.end [16/16] 0.0, 128
    %v591 = vpop.trf.xlu0
    %v592 = vpop.trf.xlu0
    %v593 = vpop.trf.xlu0
    %v594 = vpop.trf.xlu0
    %v595 = vpop.trf.xlu0
    %v596 = vpop.trf.xlu0
    %v597 = vpop.trf.xlu0
    %v598 = vpop.trf.xlu0
    %v599 = vpop.trf.xlu0
    %v600 = vpop.trf.xlu0
    %v601 = vpop.trf.xlu0
    %v602 = vpop.trf.xlu0
    %v603 = vpop.trf.xlu0
    %v604 = vpop.trf.xlu0
    %v605 = vpop.trf.xlu0
    %v606 = vpop.trf.xlu0
    %v607 = vadd.f32 %v515, %v591
    %v608 = vadd.f32 %v516, %v592
    %v609 = vadd.f32 %v517, %v593
    %v610 = vadd.f32 %v518, %v594
    %v611 = vmul.f32 %v607, 0.5
    %v612 = vmul.f32 %v608, 0.5
    %v613 = vmul.f32 %v609, 0.5
    %v614 = vmul.f32 %v610, 0.5
    %vm615 = vcmp.gt.f32.partialorder %v611, 0.5
    %vm616 = vcmp.gt.f32.partialorder %v612, 0.5
    %vm617 = vcmp.gt.f32.partialorder %v613, 0.5
    %vm618 = vcmp.gt.f32.partialorder %v614, 0.5
    %s619 = scalar_lea.vmem [#allocation5], 32
    %v620 = vld [vmem:[%s619] sm:$0xff]
    %v621 = vld [vmem:[%s619 + $0x8] sm:$0xff]
    %v622 = vld [vmem:[%s619 + $0x10] sm:$0xff]
    %v623 = vld [vmem:[%s619 + $0x18] sm:$0xff]
    %v624 = vsel %vm615, %v620, 0.0
    %v625 = vsel %vm616, %v621, 0.0
    %v626 = vsel %vm617, %v622, 0.0
    %v627 = vsel %vm618, %v623, 0.0
    %s628 = scalar_lea.vmem [#allocation11], 32
    %629 = vst.msk [vmem:[%s628] sm:$0xff] %vm117, %v624
    %630 = vst.msk [vmem:[%s628 + $0x8] sm:$0xff] %vm117, %v625
    %631 = vst.msk [vmem:[%s628 + $0x10] sm:$0xff] %vm117, %v626
    %632 = vst.msk [vmem:[%s628 + $0x18] sm:$0xff] %vm117, %v627
    // Predicated region
    $region50: #{tpu_custom_call.1} parent=1 // pred_check
      _
    $region51: #{tpu_custom_call.1} parent=1 // pred_check_branch
      %634 = sbr.rel (0) target = $region53
    $region52: #{tpu_custom_call.1} parent=1 // pred_region
      %636 = vsyncadd [#allocation4], 0
      %s637 = sshll.u32 [#allocation11], 4
      %s638 = int_to_ptr.vmem [resolvable:$true] %s637
      %s639 = sshll.u32 %s7, 4
      %s640 = int_to_ptr.hbm [resolvable:$true] %s639
      %645 = dma.vmem_to_hbm [thread:$0]  %s638, 1024, %s640, [#allocation4], 128, 128, 8
    $region53: #{tpu_custom_call.1} parent=1 // pred_fallthru
      _
    // Predicated region
    $region54: #{tpu_custom_call.1} parent=1 // pred_check
      _
    $region55: #{tpu_custom_call.1} parent=1 // pred_check_branch
      %647 = sbr.rel (0) target = $region57
    $region56: #{tpu_custom_call.1} parent=1 // pred_region
      %649 = dma.done [#allocation4], 1024
    $region57: #{tpu_custom_call.1} parent=1 // pred_fallthru
      _
    %650 = vsyncpa [#allocation3], 1
    %651 = vsyncpa [#allocation6], 1
    %652 = vsyncpa [#allocation9], 1
    %653 = vsyncpa [#allocation4], 1

</llo_original>
